<compile_context>
chip_gen: v5e
topology: v5e:2x2
jax: 0.10.0
libtpu: 0.0.40
codegen_flags: <defaults>
</compile_context>

<pallas_src>
import jax
import jax.numpy as jnp
import numpy as np
from jax.experimental import pallas as pl
from jax.experimental.pallas import tpu as pltpu

HIDDEN1 = 128
HIDDEN2 = 64
BN_EPS = 1e-5


def _round_up(n, m):
    return ((n + m - 1) // m) * m


# --------------------------------------------------------------------------
# Kernel: one batch tile, all three layers fused.  Weights are full-array
# blocks (index_map -> (0, 0)) so they stay VMEM-resident across grid steps.
# --------------------------------------------------------------------------
def dqn_kernel(x_ref, w1_ref, t1_ref, w2_ref, t2_ref, w3_ref, b3_ref, o_ref):
    # fc1 + BN1 (eval, folded) + relu
    h1 = jnp.dot(x_ref[...], w1_ref[...], preferred_element_type=jnp.float32)
    h1 = jnp.maximum(h1 + t1_ref[...], 0.0)
    # dropout(p=0.25) -> identity in eval mode.
    # fc2 + BN2 (eval, folded) + relu
    h2 = jnp.dot(h1, w2_ref[...], preferred_element_type=jnp.float32)
    h2 = jnp.maximum(h2 + t2_ref[...], 0.0)
    # fc3 Q-value head
    out = jnp.dot(h2, w3_ref[...], preferred_element_type=jnp.float32)
    o_ref[...] = out + b3_ref[...]


# --------------------------------------------------------------------------
# Wrapper: balanced batch tiling (no host-side padding) + pallas_call.
# --------------------------------------------------------------------------
def enhanced_dqn_forward(x, kp, tile_b=2048):
    """x: [B, state_size] (or [state_size]) float32.  kp: folded params."""
    if x.ndim == 1:                      # mirror torch's unsqueeze(0)
        x = x[None, :]
    x = x.astype(jnp.float32)
    B, S = x.shape
    action_size = kp["w3"].shape[1]

    # Balanced batch tile: >= 8 sublanes, <= tile_b rows.  Ragged last block
    # is handled by Pallas masked edge loads/stores (OOB rows never hit HBM
    # and cannot contaminate valid rows -- all math is row-independent).
    n_steps = max(1, pl.cdiv(B, tile_b))
    tb = _round_up(pl.cdiv(B, n_steps), 8)
    grid = (pl.cdiv(B, tb),)

    flops = 2 * B * (S * HIDDEN1 + HIDDEN1 * HIDDEN2 + HIDDEN2 * action_size)
    bytes_accessed = 4 * (
        B * (S + action_size)                      # activations in / out
        + S * HIDDEN1 + HIDDEN1                    # W1', t1'
        + HIDDEN1 * HIDDEN2 + HIDDEN2              # W2', t2'
        + HIDDEN2 * action_size + action_size)     # W3, b3

    out = pl.pallas_call(
        dqn_kernel,
        out_shape=jax.ShapeDtypeStruct((B, action_size), jnp.float32),
        grid=grid,
        in_specs=[
            pl.BlockSpec((tb, S), lambda i: (i, 0)),                 # x tile
            pl.BlockSpec((S, HIDDEN1), lambda i: (0, 0)),            # W1'
            pl.BlockSpec((1, HIDDEN1), lambda i: (0, 0)),            # t1'
            pl.BlockSpec((HIDDEN1, HIDDEN2), lambda i: (0, 0)),      # W2'
            pl.BlockSpec((1, HIDDEN2), lambda i: (0, 0)),            # t2'
            pl.BlockSpec((HIDDEN2, action_size), lambda i: (0, 0)),  # W3
            pl.BlockSpec((1, action_size), lambda i: (0, 0)),        # b3
        ],
        out_specs=pl.BlockSpec((tb, action_size), lambda i: (i, 0)),
        compiler_params=pltpu.CompilerParams(
            dimension_semantics=("parallel",)),
        cost_estimate=pl.CostEstimate(
            flops=flops, transcendentals=0, bytes_accessed=bytes_accessed),
    )(x, kp["w1"], kp["t1"], kp["w2"], kp["t2"], kp["w3"], kp["b3"])

    return out


# --------------------------------------------------------------------------
# Parameter construction (raw, PyTorch-equivalent) + BN/bias folding.
# --------------------------------------------------------------------------
def init_raw_params(key, state_size, action_size):
    """Synthetic raw parameters matching EnhancedDQN shapes (weights stored
    as (in_features, out_features), i.e. transposed vs. PyTorch)."""
    ks = jax.random.split(key, 16)

    def lin(kw, kb, fan_in, fan_out):
        bound = 1.0 / np.sqrt(fan_in)
        w = jax.random.uniform(kw, (fan_in, fan_out), jnp.float32, -bound, bound)
        b = jax.random.uniform(kb, (fan_out,), jnp.float32, -bound, bound)
        return w, b

    def bn(kg, kb, km, kv, n):
        gamma = 1.0 + 0.1 * jax.random.normal(kg, (n,), jnp.float32)
        beta = 0.1 * jax.random.normal(kb, (n,), jnp.float32)
        mean = 0.1 * jax.random.normal(km, (n,), jnp.float32)
        var = 1.0 + 0.1 * jax.random.uniform(kv, (n,), jnp.float32)
        return gamma, beta, mean, var

    w1, b1 = lin(ks[0], ks[1], state_size, HIDDEN1)
    g1, be1, m1, v1 = bn(ks[2], ks[3], ks[4], ks[5], HIDDEN1)
    w2, b2 = lin(ks[6], ks[7], HIDDEN1, HIDDEN2)
    g2, be2, m2, v2 = bn(ks[8], ks[9], ks[10], ks[11], HIDDEN2)
    w3, b3 = lin(ks[12], ks[13], HIDDEN2, action_size)

    return dict(w1=w1, b1=b1, bn1_gamma=g1, bn1_beta=be1, bn1_mean=m1, bn1_var=v1,
                w2=w2, b2=b2, bn2_gamma=g2, bn2_beta=be2, bn2_mean=m2, bn2_var=v2,
                w3=w3, b3=b3)


def fold_params(raw):
    """Fold BatchNorm (eval mode) and the linear bias into per-layer
    weight / shift pairs:  (x @ W + b) * s + t  ==  x @ (W * s) + (b * s + t)."""
    s1 = raw["bn1_gamma"] / jnp.sqrt(raw["bn1_var"] + BN_EPS)
    t1 = raw["bn1_beta"] - raw["bn1_mean"] * s1
    s2 = raw["bn2_gamma"] / jnp.sqrt(raw["bn2_var"] + BN_EPS)
    t2 = raw["bn2_beta"] - raw["bn2_mean"] * s2

    return dict(
        w1=(raw["w1"] * s1[None, :]).astype(jnp.float32),
        t1=(raw["b1"] * s1 + t1).reshape(1, HIDDEN1).astype(jnp.float32),
        w2=(raw["w2"] * s2[None, :]).astype(jnp.float32),
        t2=(raw["b2"] * s2 + t2).reshape(1, HIDDEN2).astype(jnp.float32),
        w3=raw["w3"].astype(jnp.float32),
        b3=raw["b3"].reshape(1, -1).astype(jnp.float32),
    )


# --------------------------------------------------------------------------
# Pure-JAX f32 reference (exact PyTorch eval-mode math) for correctness.
# --------------------------------------------------------------------------
def reference_forward(x, raw):
    if x.ndim == 1:
        x = x[None, :]
    s1 = raw["bn1_gamma"] / jnp.sqrt(raw["bn1_var"] + BN_EPS)
    t1 = raw["bn1_beta"] - raw["bn1_mean"] * s1
    s2 = raw["bn2_gamma"] / jnp.sqrt(raw["bn2_var"] + BN_EPS)
    t2 = raw["bn2_beta"] - raw["bn2_mean"] * s2
    h1 = jnp.maximum((x @ raw["w1"] + raw["b1"]) * s1 + t1, 0.0)
    h2 = jnp.maximum((h1 @ raw["w2"] + raw["b2"]) * s2 + t2, 0.0)
    return h2 @ raw["w3"] + raw["b3"]


if __name__ == "__main__":
    key = jax.random.PRNGKey(0)
    k_params, k_x, k_x2 = jax.random.split(key, 3)

    state_size = 32
    action_size = 8
    batch = 4

    raw = init_raw_params(k_params, state_size, action_size)
    kp = fold_params(raw)

    # Small batch: single grid step, ragged block (4 rows < 8-row tile).
    x = jax.random.normal(k_x, (batch, state_size), jnp.float32)
    out = jax.block_until_ready(enhanced_dqn_forward(x, kp))
    assert out.shape == (batch, action_size)
    ref = reference_forward(x, raw)
    np.testing.assert_allclose(np.asarray(out), np.asarray(ref),
                               rtol=2e-2, atol=2e-2)

    # Larger ragged batch with a small tile: exercises multi-step grid,
    # balanced tiling, and the masked last block (300 rows, tb=104, 3 steps).
    xb = jax.random.normal(k_x2, (300, state_size), jnp.float32)
    outb = jax.block_until_ready(enhanced_dqn_forward(xb, kp, tile_b=128))
    assert outb.shape == (300, action_size)
    refb = reference_forward(xb, raw)
    np.testing.assert_allclose(np.asarray(outb), np.asarray(refb),
                               rtol=2e-2, atol=2e-2)

    # 1-D input path (mirrors torch's unsqueeze(0)).
    out1 = jax.block_until_ready(enhanced_dqn_forward(x[0], kp))
    assert out1.shape == (1, action_size)
    np.testing.assert_allclose(np.asarray(out1),
                               np.asarray(reference_forward(x[0], raw)),
                               rtol=2e-2, atol=2e-2)

    print("KERNEL_OK")
</pallas_src>

<mosaic_0001>
module attributes {stable_mosaic.version = 11 : i64} {
  func.func @dqn_kernel(%arg0: i32, %arg1: memref<8x32xf32, #tpu.memory_space<vmem>>, %arg2: memref<32x128xf32, #tpu.memory_space<vmem>>, %arg3: memref<1x128xf32, #tpu.memory_space<vmem>>, %arg4: memref<128x64xf32, #tpu.memory_space<vmem>>, %arg5: memref<1x64xf32, #tpu.memory_space<vmem>>, %arg6: memref<64x8xf32, #tpu.memory_space<vmem>>, %arg7: memref<1x8xf32, #tpu.memory_space<vmem>>, %arg8: memref<8x8xf32, #tpu.memory_space<vmem>>) attributes {dimension_semantics = [#tpu.dimension_semantics<parallel>], iteration_bounds = array<i64: 1>, scalar_prefetch = 0 : i64, scratch_operands = 0 : i64, tpu.core_type = #tpu.core_type<tc>, window_params = [{transform_indices = @transform_0, window_bounds = array<i64: 8, 32>}, {pipeline_mode = #tpu.pipeline_mode<synchronous>, transform_indices = @transform_1, window_bounds = array<i64: 32, 128>}, {pipeline_mode = #tpu.pipeline_mode<synchronous>, transform_indices = @transform_2, window_bounds = array<i64: 1, 128>}, {pipeline_mode = #tpu.pipeline_mode<synchronous>, transform_indices = @transform_3, window_bounds = array<i64: 128, 64>}, {pipeline_mode = #tpu.pipeline_mode<synchronous>, transform_indices = @transform_4, window_bounds = array<i64: 1, 64>}, {pipeline_mode = #tpu.pipeline_mode<synchronous>, transform_indices = @transform_5, window_bounds = array<i64: 64, 8>}, {pipeline_mode = #tpu.pipeline_mode<synchronous>, transform_indices = @transform_6, window_bounds = array<i64: 1, 8>}, {transform_indices = @transform_7, window_bounds = array<i64: 8, 8>}]} {
    %c0 = arith.constant 0 : index
    %c0_0 = arith.constant 0 : index
    %0 = vector.load %arg1[%c0, %c0_0] : memref<8x32xf32, #tpu.memory_space<vmem>>, vector<8x32xf32>
    %c0_1 = arith.constant 0 : index
    %c0_2 = arith.constant 0 : index
    %1 = vector.load %arg2[%c0_1, %c0_2] : memref<32x128xf32, #tpu.memory_space<vmem>>, vector<32x128xf32>
    %cst = arith.constant dense<0.000000e+00> : vector<8x128xf32>
    %2 = tpu.matmul %0, %1, %cst {dimension_numbers = #tpu.dot_dimension_numbers<[1], [0], [0], [1], [0, 0, 1, 1], [], []>} : vector<8x32xf32>, vector<32x128xf32>, vector<8x128xf32> -> vector<8x128xf32>
    %c0_3 = arith.constant 0 : index
    %c0_4 = arith.constant 0 : index
    %3 = vector.load %arg3[%c0_3, %c0_4] : memref<1x128xf32, #tpu.memory_space<vmem>>, vector<1x128xf32>
    %4 = vector.broadcast %3 : vector<1x128xf32> to vector<8x128xf32>
    %5 = arith.addf %2, %4 : vector<8x128xf32>
    %cst_5 = arith.constant 0.000000e+00 : f32
    %6 = vector.broadcast %cst_5 : f32 to vector<8x128xf32>
    %7 = arith.maximumf %5, %6 : vector<8x128xf32>
    %c0_6 = arith.constant 0 : index
    %c0_7 = arith.constant 0 : index
    %8 = vector.load %arg4[%c0_6, %c0_7] : memref<128x64xf32, #tpu.memory_space<vmem>>, vector<128x64xf32>
    %cst_8 = arith.constant dense<0.000000e+00> : vector<8x64xf32>
    %9 = tpu.matmul %7, %8, %cst_8 {dimension_numbers = #tpu.dot_dimension_numbers<[1], [0], [0], [1], [0, 0, 1, 1], [], []>} : vector<8x128xf32>, vector<128x64xf32>, vector<8x64xf32> -> vector<8x64xf32>
    %c0_9 = arith.constant 0 : index
    %c0_10 = arith.constant 0 : index
    %10 = vector.load %arg5[%c0_9, %c0_10] : memref<1x64xf32, #tpu.memory_space<vmem>>, vector<1x64xf32>
    %11 = vector.broadcast %10 : vector<1x64xf32> to vector<8x64xf32>
    %12 = arith.addf %9, %11 : vector<8x64xf32>
    %cst_11 = arith.constant 0.000000e+00 : f32
    %13 = vector.broadcast %cst_11 : f32 to vector<8x64xf32>
    %14 = arith.maximumf %12, %13 : vector<8x64xf32>
    %c0_12 = arith.constant 0 : index
    %c0_13 = arith.constant 0 : index
    %15 = vector.load %arg6[%c0_12, %c0_13] : memref<64x8xf32, #tpu.memory_space<vmem>>, vector<64x8xf32>
    %cst_14 = arith.constant dense<0.000000e+00> : vector<8x8xf32>
    %16 = tpu.matmul %14, %15, %cst_14 {dimension_numbers = #tpu.dot_dimension_numbers<[1], [0], [0], [1], [0, 0, 1, 1], [], []>} : vector<8x64xf32>, vector<64x8xf32>, vector<8x8xf32> -> vector<8x8xf32>
    %c0_15 = arith.constant 0 : index
    %c0_16 = arith.constant 0 : index
    %17 = vector.load %arg7[%c0_15, %c0_16] : memref<1x8xf32, #tpu.memory_space<vmem>>, vector<1x8xf32>
    %18 = vector.broadcast %17 : vector<1x8xf32> to vector<8x8xf32>
    %19 = arith.addf %16, %18 : vector<8x8xf32>
    %c0_17 = arith.constant 0 : index
    %c0_18 = arith.constant 0 : index
    %20 = vector.load %arg8[%c0_17, %c0_18] : memref<8x8xf32, #tpu.memory_space<vmem>>, vector<8x8xf32>
    tpu.vector_store %arg8[%c0_17, %c0_18], %19 {strides = array<i32>} : memref<8x8xf32, #tpu.memory_space<vmem>>, vector<8x8xf32>,
    return
  }
  func.func @transform_0(%arg0: i32) -> (i32, i32) {
    %c0_i32 = arith.constant 0 : i32
    %c0_i32_0 = arith.constant 0 : i32
    return %arg0, %c0_i32 : i32, i32
  }
  func.func @transform_1(%arg0: i32) -> (i32, i32) {
    %c0_i32 = arith.constant 0 : i32
    %c0_i32_0 = arith.constant 0 : i32
    %c0_i32_1 = arith.constant 0 : i32
    return %c0_i32, %c0_i32_0 : i32, i32
  }
  func.func @transform_2(%arg0: i32) -> (i32, i32) {
    %c0_i32 = arith.constant 0 : i32
    %c0_i32_0 = arith.constant 0 : i32
    %c0_i32_1 = arith.constant 0 : i32
    return %c0_i32, %c0_i32_0 : i32, i32
  }
  func.func @transform_3(%arg0: i32) -> (i32, i32) {
    %c0_i32 = arith.constant 0 : i32
    %c0_i32_0 = arith.constant 0 : i32
    %c0_i32_1 = arith.constant 0 : i32
    return %c0_i32, %c0_i32_0 : i32, i32
  }
  func.func @transform_4(%arg0: i32) -> (i32, i32) {
    %c0_i32 = arith.constant 0 : i32
    %c0_i32_0 = arith.constant 0 : i32
    %c0_i32_1 = arith.constant 0 : i32
    return %c0_i32, %c0_i32_0 : i32, i32
  }
  func.func @transform_5(%arg0: i32) -> (i32, i32) {
    %c0_i32 = arith.constant 0 : i32
    %c0_i32_0 = arith.constant 0 : i32
    %c0_i32_1 = arith.constant 0 : i32
    return %c0_i32, %c0_i32_0 : i32, i32
  }
  func.func @transform_6(%arg0: i32) -> (i32, i32) {
    %c0_i32 = arith.constant 0 : i32
    %c0_i32_0 = arith.constant 0 : i32
    %c0_i32_1 = arith.constant 0 : i32
    return %c0_i32, %c0_i32_0 : i32, i32
  }
  func.func @transform_7(%arg0: i32) -> (i32, i32) {
    %c0_i32 = arith.constant 0 : i32
    %c0_i32_0 = arith.constant 0 : i32
    return %arg0, %c0_i32 : i32, i32
  }
}

</mosaic_0001>

<llo_original>
// kernel: tpu_custom_call.1
$region0: #{tpu_custom_call.1}
  #allocation0 [shape = 'u32[]', space=smem, size = 0x4, offset = 0x4, fixed_abs, tag = 'smem constant byte address 0x4 - core index']
  #allocation1 [shape = 'u32[72,128]{1,0:T(1,128)}', space=vmem, size = 0x9000, scoped, tag = 'internal scratch']
  %s0 = inlined_call_operand.vmem [shape: f32[4,32], index: 0, kind: input, shape index: {}]
  %s1 = inlined_call_operand.vmem [shape: f32[32,128], index: 1, kind: input, shape index: {}]
  %s2 = inlined_call_operand.vmem [shape: f32[1,128], index: 2, kind: input, shape index: {}]
  %s3 = inlined_call_operand.vmem [shape: f32[128,64], index: 3, kind: input, shape index: {}]
  %s4 = inlined_call_operand.vmem [shape: f32[1,64], index: 4, kind: input, shape index: {}]
  %s5 = inlined_call_operand.vmem [shape: f32[64,8], index: 5, kind: input, shape index: {}]
  %s6 = inlined_call_operand.vmem [shape: f32[1,8], index: 6, kind: input, shape index: {}]
  %s7 = inlined_call_operand.hbm [shape: f32[4,8], index: 7, kind: output, shape index: {}]
  %s8 = sld [smem:[#allocation0]]
  $region38: #{tpu_custom_call.1} parent=0
    _
  %s10 = ssub.s32 1, %s8
  %s11 = scalar_select 0, %s10, %s8
  $region1: #{tpu_custom_call.1} parent=0
    #allocation2 [shape = 'u8[4096]{0}', space=vmem, size = 0x1000, scoped, tag = 'output window, operand 0, single buffered']
    #allocation3 [shape = 's32[1]{0}', space=sflag, size = 0x4, scoped, tag = 'scoped memory for tpu_custom_call.1']
    %12 = vsyncpa [#allocation3], 0
    // Predicated region
    $region2: #{tpu_custom_call.1} parent=1 // pred_check
      _
    $region3: #{tpu_custom_call.1} parent=1 // pred_check_branch
      %14 = sbr.rel (0) target = $region5
    $region4: #{tpu_custom_call.1} parent=1 // pred_region
      _
    $region5: #{tpu_custom_call.1} parent=1 // pred_fallthru
      _
    // Predicated region
    $region6: #{tpu_custom_call.1} parent=1 // pred_check
      _
    $region7: #{tpu_custom_call.1} parent=1 // pred_check_branch
      %16 = sbr.rel (0) target = $region9
    $region8: #{tpu_custom_call.1} parent=1 // pred_region
      _
    $region9: #{tpu_custom_call.1} parent=1 // pred_fallthru
      _
    // Predicated region
    $region10: #{tpu_custom_call.1} parent=1 // pred_check
      _
    $region11: #{tpu_custom_call.1} parent=1 // pred_check_branch
      %18 = sbr.rel (0) target = $region13
    $region12: #{tpu_custom_call.1} parent=1 // pred_region
      _
    $region13: #{tpu_custom_call.1} parent=1 // pred_fallthru
      _
    // Predicated region
    $region14: #{tpu_custom_call.1} parent=1 // pred_check
      _
    $region15: #{tpu_custom_call.1} parent=1 // pred_check_branch
      %20 = sbr.rel (0) target = $region17
    $region16: #{tpu_custom_call.1} parent=1 // pred_region
      _
    $region17: #{tpu_custom_call.1} parent=1 // pred_fallthru
      _
    // Predicated region
    $region18: #{tpu_custom_call.1} parent=1 // pred_check
      _
    $region19: #{tpu_custom_call.1} parent=1 // pred_check_branch
      %22 = sbr.rel (0) target = $region21
    $region20: #{tpu_custom_call.1} parent=1 // pred_region
      _
    $region21: #{tpu_custom_call.1} parent=1 // pred_fallthru
      _
    // Predicated region
    $region22: #{tpu_custom_call.1} parent=1 // pred_check
      _
    $region23: #{tpu_custom_call.1} parent=1 // pred_check_branch
      %24 = sbr.rel (0) target = $region25
    $region24: #{tpu_custom_call.1} parent=1 // pred_region
      _
    $region25: #{tpu_custom_call.1} parent=1 // pred_fallthru
      _
    // Predicated region
    $region26: #{tpu_custom_call.1} parent=1 // pred_check
      _
    $region27: #{tpu_custom_call.1} parent=1 // pred_check_branch
      %26 = sbr.rel (0) target = $region29
    $region28: #{tpu_custom_call.1} parent=1 // pred_region
      _
    $region29: #{tpu_custom_call.1} parent=1 // pred_fallthru
      _
    %v27 = vld [vmem:[%s0] sm:$0xff]
    %v28 = vld [vmem:[%s1] sm:$0xff]
    %v29 = vld [vmem:[%s1 + $0x8] sm:$0xff]
    %v30 = vld [vmem:[%s1 + $0x10] sm:$0xff]
    %v31 = vld [vmem:[%s1 + $0x18] sm:$0xff]
    %v32 = vld [vmem:[%s2] sm:$0x1]
    %v34 = vperm.slane %v32, 0
    %vm36 = vcmask 261120
    %v38 = vsel %vm36, %v27, 0
    %40 = vmatpush.msra.mxu0 0.0
    %41 = vmatpush.msra.mxu0 0.0
    %42 = vmatpush.msra.mxu0 0.0
    %43 = vmatpush.msra.mxu0 0.0
    %44 = vmatpush.msra.mxu0 0.0
    %45 = vmatpush.msra.mxu0 0.0
    %46 = vmatpush.msra.mxu0 0.0
    %47 = vmatpush.msra.mxu0 0.0
    %48 = vmatpush.msra.mxu0 0.0
    %49 = vmatpush.msra.mxu0 0.0
    %50 = vmatpush.msra.mxu0 0.0
    %51 = vmatpush.msra.mxu0 0.0
    %52 = vmatpush.msra.mxu0 %v31
    %53 = vmatpush.msra.mxu0 %v30
    %54 = vmatpush.msra.mxu0 %v29
    %55 = vmatpush.msra.mxu0 %v28
    %56 = vmatmul.f32.gmra.mxu0 %v38
    %v57 = vpop.f32.mrf.mxu0
    %v58 = vadd.f32 %v34, %v57
    %59 = vdwg.mxu0
    %v60 = vmax.f32 %v58, 0.0
    %v61 = vld [vmem:[%s3] sm:$0xff]
    %v62 = vld [vmem:[%s3 + $0x8] sm:$0xff]
    %v63 = vld [vmem:[%s3 + $0x10] sm:$0xff]
    %v64 = vld [vmem:[%s3 + $0x18] sm:$0xff]
    %v65 = vld [vmem:[%s3 + $0x20] sm:$0xff]
    %v66 = vld [vmem:[%s3 + $0x28] sm:$0xff]
    %v67 = vld [vmem:[%s3 + $0x30] sm:$0xff]
    %v68 = vld [vmem:[%s3 + $0x38] sm:$0xff]
    %v69 = vld [vmem:[%s3 + $0x40] sm:$0xff]
    %v70 = vld [vmem:[%s3 + $0x48] sm:$0xff]
    %v71 = vld [vmem:[%s3 + $0x50] sm:$0xff]
    %v72 = vld [vmem:[%s3 + $0x58] sm:$0xff]
    %v73 = vld [vmem:[%s3 + $0x60] sm:$0xff]
    %v74 = vld [vmem:[%s3 + $0x68] sm:$0xff]
    %v75 = vld [vmem:[%s3 + $0x70] sm:$0xff]
    %v76 = vld [vmem:[%s3 + $0x78] sm:$0xff]
    %v77 = vld [vmem:[%s4] sm:$0x1]
    %v79 = vperm.slane %v77, 0
    %81 = vmatpush.msra.mxu0 %v76
    %82 = vmatpush.msra.mxu0 %v75
    %83 = vmatpush.msra.mxu0 %v74
    %84 = vmatpush.msra.mxu0 %v73
    %85 = vmatpush.msra.mxu0 %v72
    %86 = vmatpush.msra.mxu0 %v71
    %87 = vmatpush.msra.mxu0 %v70
    %88 = vmatpush.msra.mxu0 %v69
    %89 = vmatpush.msra.mxu0 %v68
    %90 = vmatpush.msra.mxu0 %v67
    %91 = vmatpush.msra.mxu0 %v66
    %92 = vmatpush.msra.mxu0 %v65
    %93 = vmatpush.msra.mxu0 %v64
    %94 = vmatpush.msra.mxu0 %v63
    %95 = vmatpush.msra.mxu0 %v62
    %96 = vmatpush.msra.mxu0 %v61
    %97 = vmatmul.f32.gmra.mxu0 %v60
    %v98 = vpop.f32.mrf.mxu0
    %v99 = vadd.f32 %v79, %v98
    %100 = vdwg.mxu0
    %v101 = vmax.f32 %v99, 0.0
    %v102 = vld [vmem:[%s5] sm:$0xff]
    %v103 = vld [vmem:[%s5 + $0x8] sm:$0xff]
    %v104 = vld [vmem:[%s5 + $0x10] sm:$0xff]
    %v105 = vld [vmem:[%s5 + $0x18] sm:$0xff]
    %v106 = vld [vmem:[%s5 + $0x20] sm:$0xff]
    %v107 = vld [vmem:[%s5 + $0x28] sm:$0xff]
    %v108 = vld [vmem:[%s5 + $0x30] sm:$0xff]
    %v109 = vld [vmem:[%s5 + $0x38] sm:$0xff]
    %v110 = vld [vmem:[%s6] sm:$0x1]
    %v112 = vperm.slane %v110, 0
    %vm114 = vcmask 523264
    %v116 = vsel %vm114, %v101, 0
    %118 = vmatpush.msra.mxu0 0.0
    %119 = vmatpush.msra.mxu0 0.0
    %120 = vmatpush.msra.mxu0 0.0
    %121 = vmatpush.msra.mxu0 0.0
    %122 = vmatpush.msra.mxu0 0.0
    %123 = vmatpush.msra.mxu0 0.0
    %124 = vmatpush.msra.mxu0 0.0
    %125 = vmatpush.msra.mxu0 0.0
    %126 = vmatpush.msra.mxu0 %v109
    %127 = vmatpush.msra.mxu0 %v108
    %128 = vmatpush.msra.mxu0 %v107
    %129 = vmatpush.msra.mxu0 %v106
    %130 = vmatpush.msra.mxu0 %v105
    %131 = vmatpush.msra.mxu0 %v104
    %132 = vmatpush.msra.mxu0 %v103
    %133 = vmatpush.msra.mxu0 %v102
    %134 = vmatmul.f32.gmra.mxu0 %v116
    %v135 = vpop.f32.mrf.mxu0
    %v136 = vadd.f32 %v112, %v135
    %137 = vdwg.mxu0
    %vm138 = vcmask 64512
    %139 = vst.msk [vmem:[#allocation2] sm:$0xff] %vm138, %v136
    // Predicated region
    $region30: #{tpu_custom_call.1} parent=1 // pred_check
      _
    $region31: #{tpu_custom_call.1} parent=1 // pred_check_branch
      %141 = sbr.rel (0) target = $region33
    $region32: #{tpu_custom_call.1} parent=1 // pred_region
      %143 = vsyncadd [#allocation3], 64
      %s144 = sshll.u32 [#allocation2], 4
      %s145 = int_to_ptr.vmem [resolvable:$true] %s144
      %s146 = sshll.u32 %s7, 4
      %s147 = int_to_ptr.hbm [resolvable:$true] %s146
      %152 = dma.vmem_to_hbm [thread:$0]  %s145, 64, %s147, [#allocation3], 64, 64, 4
    $region33: #{tpu_custom_call.1} parent=1 // pred_fallthru
      _
    // Predicated region
    $region34: #{tpu_custom_call.1} parent=1 // pred_check
      _
    $region35: #{tpu_custom_call.1} parent=1 // pred_check_branch
      %154 = sbr.rel (0) target = $region37
    $region36: #{tpu_custom_call.1} parent=1 // pred_region
      %156 = dma.done [#allocation3], 128
    $region37: #{tpu_custom_call.1} parent=1 // pred_fallthru
      _
    %157 = vsyncpa [#allocation3], 1

</llo_original>
